<compile_context>
chip_gen: v7x
topology: tpu7x:2x2x1
jax: 0.10.0
libtpu: 0.0.40
codegen_flags: <defaults>
</compile_context>

<pallas_src>
import functools

import jax
import jax.numpy as jnp
from jax.experimental import pallas as pl
from jax.experimental.pallas import tpu as pltpu


# --------------------------- Pallas kernels ---------------------------------

def _pointnet_kernel(x_ref, m_ref, w_ref, s_ref, b_ref, o_ref):
    """Linear(bias=False) + folded BN1d + ReLU + point-mask on flat (M, C)."""
    y = jnp.dot(x_ref[...], w_ref[...], preferred_element_type=jnp.float32)
    y = y * s_ref[...] + b_ref[...]
    y = jnp.maximum(y, 0.0) * m_ref[...]
    o_ref[...] = y.astype(o_ref.dtype)


def _fill_padded(xp_ref, x):
    """Zero 1-px halo + interior into the f32 VMEM scratch (no HBM pad pass)."""
    H, W, Cin = x.shape
    z = xp_ref.dtype
    xp_ref[0:1, :, :] = jnp.zeros((1, W + 2, Cin), z)
    xp_ref[H + 1:H + 2, :, :] = jnp.zeros((1, W + 2, Cin), z)
    xp_ref[:, 0:1, :] = jnp.zeros((H + 2, 1, Cin), z)
    xp_ref[:, W + 1:W + 2, :] = jnp.zeros((H + 2, 1, Cin), z)
    xp_ref[1:H + 1, 1:W + 1, :] = x.astype(z)


def _conv_accum(xp_ref, w_ref, stride):
    """3x3 conv on the padded scratch; kw taps concatenated so K = 3*Cin."""
    Hp, Wp, Cin = xp_ref.shape
    H, W = Hp - 2, Wp - 2
    Ho = (H - 1) // stride + 1
    Wo = (W - 1) // stride + 1
    Cout = w_ref.shape[-1]
    acc = jnp.zeros((Ho * Wo, Cout), jnp.float32)
    for kh in range(3):
        taps = []
        for kw in range(3):
            if stride == 1:
                taps.append(xp_ref[kh:kh + Ho, kw:kw + Wo, :])
            else:
                # direct strided conv: only the kept output positions are read
                taps.append(xp_ref[pl.ds(kh, Ho, stride),
                                   pl.ds(kw, Wo, stride), :])
        patch = jnp.concatenate(taps, axis=-1).astype(jnp.bfloat16)
        patch = patch.reshape(Ho * Wo, 3 * Cin)
        acc = acc + jnp.dot(patch, w_ref[kh],
                            preferred_element_type=jnp.float32)
    return acc


def _conv3x3_kernel(x_ref, w_ref, s_ref, b_ref, o_ref, xp_ref, *, stride, relu):
    """3x3 conv (pad=1, stride 1 or 2) + folded BN (scale/bias) + opt. ReLU."""
    _fill_padded(xp_ref, x_ref[0])
    acc = _conv_accum(xp_ref, w_ref, stride)
    y = acc * s_ref[...] + b_ref[...]
    if relu:
        y = jnp.maximum(y, 0.0)
    o_ref[0] = y.astype(o_ref.dtype)


def _conv3x3_cat3_kernel(x1_ref, x2_ref, x3_ref, w_ref, o_ref, xp_ref):
    """Final conv fused over the 3 deconv branches: channel concat in VMEM."""
    x = jnp.concatenate([x1_ref[0], x2_ref[0], x3_ref[0]], axis=-1)
    _fill_padded(xp_ref, x)
    acc = _conv_accum(xp_ref, w_ref, stride=1)
    o_ref[0] = acc.astype(o_ref.dtype)


def _deconv_s2_kernel(x_ref, wee_ref, weo_ref, woe_ref, woo_ref, b_ref, o_ref,
                      xp_ref):
    """ConvTranspose2d(k=3, s=2, p=1, op=1) as 4 sub-pixel phase matmuls."""
    _, Hin, Win, C = x_ref.shape
    z = xp_ref.dtype
    xp_ref[Hin:Hin + 1, :, :] = jnp.zeros((1, Win + 1, C), z)
    xp_ref[:, Win:Win + 1, :] = jnp.zeros((Hin + 1, 1, C), z)
    xp_ref[0:Hin, 0:Win, :] = x_ref[0].astype(z)
    M = Hin * Win
    bf = jnp.bfloat16
    x00 = xp_ref[0:Hin, 0:Win, :].reshape(M, C).astype(bf)
    x01 = xp_ref[0:Hin, 1:Win + 1, :].reshape(M, C).astype(bf)
    x10 = xp_ref[1:Hin + 1, 0:Win, :].reshape(M, C).astype(bf)
    x11 = xp_ref[1:Hin + 1, 1:Win + 1, :].reshape(M, C).astype(bf)
    ee = jnp.dot(x00, wee_ref[...], preferred_element_type=jnp.float32)
    eo = jnp.dot(jnp.concatenate([x00, x01], axis=-1), weo_ref[...],
                 preferred_element_type=jnp.float32)
    oe = jnp.dot(jnp.concatenate([x00, x10], axis=-1), woe_ref[...],
                 preferred_element_type=jnp.float32)
    oo = jnp.dot(jnp.concatenate([x00, x01, x10, x11], axis=-1), woo_ref[...],
                 preferred_element_type=jnp.float32)
    y = jnp.concatenate([ee, eo, oe, oo], axis=-1) + b_ref[...]
    o_ref[0] = y.astype(o_ref.dtype)


def _deconv_s4_kernel(x_ref, w_ref, o_ref):
    """ConvTranspose2d(k=3, s=4, p=0, op=1): pure 1x1 phases, one wide matmul."""
    _, Hin, Win, C = x_ref.shape
    x = x_ref[0].reshape(Hin * Win, C)
    o_ref[0] = jnp.dot(x, w_ref[...],
                       preferred_element_type=jnp.float32).astype(o_ref.dtype)


# --------------------------- pallas_call wrappers ----------------------------

def pointnet_pallas(feat, mask, w, scale, bias):
    B, P, Cin = feat.shape
    Cout = w.shape[1]
    BP = B * P
    tm = 512 if BP % 512 == 0 else BP
    x = feat.reshape(BP, Cin).astype(jnp.bfloat16)
    m = mask.reshape(BP, 1).astype(jnp.float32)
    out = pl.pallas_call(
        _pointnet_kernel,
        out_shape=jax.ShapeDtypeStruct((BP, Cout), jnp.float32),
        grid=(BP // tm,),
        in_specs=[
            pl.BlockSpec((tm, Cin), lambda i: (i, 0)),
            pl.BlockSpec((tm, 1), lambda i: (i, 0)),
            pl.BlockSpec((Cin, Cout), lambda i: (0, 0)),
            pl.BlockSpec((1, Cout), lambda i: (0, 0)),
            pl.BlockSpec((1, Cout), lambda i: (0, 0)),
        ],
        out_specs=pl.BlockSpec((tm, Cout), lambda i: (i, 0)),
        compiler_params=pltpu.CompilerParams(dimension_semantics=("parallel",)),
    )(x, m, w, scale, bias)
    return out.reshape(B, P, Cout)


def conv3x3_pallas(x, w_packed, scale, bias, *, stride, relu, out_dtype):
    # TODO(synk): at the module's real 512x512 grid the per-batch block must be
    # row-tiled with a halo DMA (v7x 64MiB VMEM); demo sizes fit comfortably.
    B, H, W, Cin = x.shape
    Cout = w_packed.shape[-1]
    Ho = (H - 1) // stride + 1
    Wo = (W - 1) // stride + 1
    kern = functools.partial(_conv3x3_kernel, stride=stride, relu=relu)
    out = pl.pallas_call(
        kern,
        out_shape=jax.ShapeDtypeStruct((B, Ho * Wo, Cout), out_dtype),
        grid=(B,),
        in_specs=[
            pl.BlockSpec((1, H, W, Cin), lambda b: (b, 0, 0, 0)),
            pl.BlockSpec((3, 3 * Cin, Cout), lambda b: (0, 0, 0)),
            pl.BlockSpec((1, Cout), lambda b: (0, 0)),
            pl.BlockSpec((1, Cout), lambda b: (0, 0)),
        ],
        out_specs=pl.BlockSpec((1, Ho * Wo, Cout), lambda b: (b, 0, 0)),
        scratch_shapes=[pltpu.VMEM((H + 2, W + 2, Cin), jnp.float32)],
        compiler_params=pltpu.CompilerParams(dimension_semantics=("parallel",)),
    )(x, w_packed, scale, bias)
    return out.reshape(B, Ho, Wo, Cout)


def conv3x3_cat3_pallas(x1, x2, x3, w_packed, *, out_dtype):
    B, H, W, C = x1.shape
    Cout = w_packed.shape[-1]
    out = pl.pallas_call(
        _conv3x3_cat3_kernel,
        out_shape=jax.ShapeDtypeStruct((B, H * W, Cout), out_dtype),
        grid=(B,),
        in_specs=[
            pl.BlockSpec((1, H, W, C), lambda b: (b, 0, 0, 0)),
            pl.BlockSpec((1, H, W, C), lambda b: (b, 0, 0, 0)),
            pl.BlockSpec((1, H, W, C), lambda b: (b, 0, 0, 0)),
            pl.BlockSpec((3, 9 * C, Cout), lambda b: (0, 0, 0)),
        ],
        out_specs=pl.BlockSpec((1, H * W, Cout), lambda b: (b, 0, 0)),
        scratch_shapes=[pltpu.VMEM((H + 2, W + 2, 3 * C), jnp.float32)],
        compiler_params=pltpu.CompilerParams(dimension_semantics=("parallel",)),
    )(x1, x2, x3, w_packed)
    return out.reshape(B, H, W, Cout)


def deconv_s2_pallas(x, w_ee, w_eo, w_oe, w_oo, bias4, *, out_dtype):
    B, Hin, Win, C = x.shape
    Cout = w_ee.shape[-1]
    out = pl.pallas_call(
        _deconv_s2_kernel,
        out_shape=jax.ShapeDtypeStruct((B, Hin * Win, 4 * Cout), out_dtype),
        grid=(B,),
        in_specs=[
            pl.BlockSpec((1, Hin, Win, C), lambda b: (b, 0, 0, 0)),
            pl.BlockSpec((C, Cout), lambda b: (0, 0)),
            pl.BlockSpec((2 * C, Cout), lambda b: (0, 0)),
            pl.BlockSpec((2 * C, Cout), lambda b: (0, 0)),
            pl.BlockSpec((4 * C, Cout), lambda b: (0, 0)),
            pl.BlockSpec((1, 4 * Cout), lambda b: (0, 0)),
        ],
        out_specs=pl.BlockSpec((1, Hin * Win, 4 * Cout), lambda b: (b, 0, 0)),
        scratch_shapes=[pltpu.VMEM((Hin + 1, Win + 1, C), jnp.float32)],
        compiler_params=pltpu.CompilerParams(dimension_semantics=("parallel",)),
    )(x, w_ee, w_eo, w_oe, w_oo, bias4)
    # interleave phases [ee|eo|oe|oo] -> out[2m+ph, 2n+pw]  (cheap XLA shuffle)
    y = out.reshape(B, Hin, Win, 2, 2, Cout)
    y = jnp.transpose(y, (0, 1, 3, 2, 4, 5))
    return y.reshape(B, 2 * Hin, 2 * Win, Cout)


def deconv_s4_pallas(x, w_cat, bias, *, out_dtype):
    B, Hin, Win, C = x.shape
    Cout = bias.shape[-1]
    y = pl.pallas_call(
        _deconv_s4_kernel,
        out_shape=jax.ShapeDtypeStruct((B, Hin * Win, 9 * Cout), jnp.float32),
        grid=(B,),
        in_specs=[
            pl.BlockSpec((1, Hin, Win, C), lambda b: (b, 0, 0, 0)),
            pl.BlockSpec((C, 9 * Cout), lambda b: (0, 0)),
        ],
        out_specs=pl.BlockSpec((1, Hin * Win, 9 * Cout), lambda b: (b, 0, 0)),
        compiler_params=pltpu.CompilerParams(dimension_semantics=("parallel",)),
    )(x, w_cat)
    # phases (r, c) in {0,1,2}; r==3 / c==3 positions receive bias only.
    y = y.reshape(B, Hin, Win, 3, 3, Cout)
    y = jnp.pad(y, ((0, 0), (0, 0), (0, 0), (0, 1), (0, 1), (0, 0)))
    y = y + bias.reshape(1, 1, 1, 1, 1, Cout)
    y = jnp.transpose(y, (0, 1, 3, 2, 4, 5))
    return y.reshape(B, 4 * Hin, 4 * Win, Cout).astype(out_dtype)


# --------------------------- plain-JAX pieces --------------------------------

def batched_unsorted_segment_max(data, segment_ids, num_segments, paddings):
    # TODO(synk): data-dependent scatter-max has no clean Pallas equivalent;
    # padded points are excluded, empty voxels produce 0 (plain JAX).
    neg = jnp.float32(-1e30)
    masked = jnp.where(paddings[..., None] > 0.5, neg, data)

    def one(d, s):
        return jax.ops.segment_max(d, s, num_segments=num_segments)

    out = jax.vmap(one)(masked, segment_ids)
    return jnp.where(out < -1e29, 0.0, out)


def bilinear_interpolate(im, xy):
    # TODO(synk): multi_view_utils.bilinear_interpolate_torch source unavailable;
    # standard 4-neighbour bilinear gather implemented in plain JAX.
    x = xy[..., 0]
    y = xy[..., 1]
    x0 = jnp.floor(x)
    x1 = x0 + 1.0
    y0 = jnp.floor(y)
    y1 = y0 + 1.0
    d0, d1 = im.shape[1], im.shape[2]
    x0i = jnp.clip(x0.astype(jnp.int32), 0, d0 - 1)
    x1i = jnp.clip(x1.astype(jnp.int32), 0, d0 - 1)
    y0i = jnp.clip(y0.astype(jnp.int32), 0, d1 - 1)
    y1i = jnp.clip(y1.astype(jnp.int32), 0, d1 - 1)

    def gather(im_b, xi, yi):
        return im_b[xi, yi]

    Ia = jax.vmap(gather)(im, x0i, y0i)
    Ib = jax.vmap(gather)(im, x0i, y1i)
    Ic = jax.vmap(gather)(im, x1i, y0i)
    Id = jax.vmap(gather)(im, x1i, y1i)
    wa = ((x1 - x) * (y1 - y))[..., None]
    wb = ((x1 - x) * (y - y0))[..., None]
    wc = ((x - x0) * (y1 - y))[..., None]
    wd = ((x - x0) * (y - y0))[..., None]
    return Ia * wa + Ib * wb + Ic * wc + Id * wd


def single_view_net_forward(params, points_xyz, points_feature, points_mask,
                            points_voxel, grid_size=(16, 16, 1)):
    del points_xyz  # unused in the reference forward as well
    B = points_feature.shape[0]

    pf = pointnet_pallas(points_feature, points_mask,
                         params["pn_w"], params["pn_scale"], params["pn_bias"])

    voxels = batched_unsorted_segment_max(
        pf, points_voxel["indices"], points_voxel["num_voxels"],
        points_voxel["paddings"])
    gs = [g for g in grid_size if g > 1]
    nc = voxels.shape[-1]
    x = voxels.reshape([B] + gs + [nc]).astype(jnp.bfloat16)   # NHWC, bf16

    o1 = conv3x3_pallas(x, params["res1_w"], params["res1_s"], params["res1_b"],
                        stride=2, relu=True, out_dtype=jnp.bfloat16)
    o2 = conv3x3_pallas(o1, params["res2_w"], params["res2_s"], params["res2_b"],
                        stride=2, relu=True, out_dtype=jnp.bfloat16)
    o3 = conv3x3_pallas(o2, params["res3_w"], params["res3_s"], params["res3_b"],
                        stride=2, relu=True, out_dtype=jnp.bfloat16)

    # deconv1 (s=1, p=1) == 3x3 conv with pre-flipped weights (prepacked).
    d1 = conv3x3_pallas(o1, params["dc1_w"], params["dc1_s"], params["dc1_b"],
                        stride=1, relu=False, out_dtype=jnp.bfloat16)
    d2 = deconv_s2_pallas(o2, params["dc2_w_ee"], params["dc2_w_eo"],
                          params["dc2_w_oe"], params["dc2_w_oo"],
                          params["dc2_b4"], out_dtype=jnp.bfloat16)
    d3 = deconv_s4_pallas(o3, params["dc3_w"], params["dc3_b"],
                          out_dtype=jnp.bfloat16)

    # Final 192->64 conv fused over the three branches (no 192-ch concat/pad).
    v = conv3x3_cat3_pallas(d1, d2, d3, params["conv_w"], out_dtype=jnp.float32)

    # torch permute(0,3,2,1) on NCHW -> [B, W', H', C]; in NHWC this is a swap
    # of the two spatial axes.
    v_t = jnp.transpose(v, (0, 2, 1, 3))
    return bilinear_interpolate(v_t, points_voxel["voxel_xyz"][:, :, :2])


# --------------------------- Deterministic parameters ------------------------

def make_params(key):
    it = iter(jax.random.split(key, 64))

    def nrm(shape, s=0.05):
        return (s * jax.random.normal(next(it), shape)).astype(jnp.float32)

    def bn_fold(C, eps):
        gamma = 1.0 + 0.1 * jax.random.normal(next(it), (C,))
        beta = 0.1 * jax.random.normal(next(it), (C,))
        mean = 0.1 * jax.random.normal(next(it), (C,))
        var = 0.5 + 0.5 * jnp.abs(jax.random.normal(next(it), (C,)))
        scale = gamma / jnp.sqrt(var + eps)
        bias = beta - mean * scale
        return (scale.reshape(1, C).astype(jnp.float32),
                bias.reshape(1, C).astype(jnp.float32))

    bf = jnp.bfloat16
    p = {}
    # PointNet: Linear(64, 64, bias=False) (torch weight (out, in)) + BN1d.
    w_lin = nrm((64, 64))
    p["pn_w"] = jnp.transpose(w_lin).astype(bf)            # (in, out)
    p["pn_scale"], p["pn_bias"] = bn_fold(64, 1e-5)

    # BasicBlocks: Conv2d(64,64,3,stride=2,pad=1,bias=False) + BN2d + ReLU.
    for name in ("res1", "res2", "res3"):
        w_oihw = nrm((64, 64, 3, 3))
        w_hwio = jnp.transpose(w_oihw, (2, 3, 1, 0))        # (kh, kw, ci, co)
        p[f"{name}_w"] = w_hwio.reshape(3, 3 * 64, 64).astype(bf)
        p[f"{name}_s"], p[f"{name}_b"] = bn_fold(64, 1e-3)

    # ConvTranspose2d weights are IOHW (ci, co, kh, kw) in torch; bias=True.
    # deconv1 (s=1,p=1): equivalent 3x3 conv with spatially flipped weights.
    w_t = nrm((64, 64, 3, 3))
    w_hwio = jnp.transpose(w_t[:, :, ::-1, ::-1], (2, 3, 0, 1))
    p["dc1_w"] = w_hwio.reshape(3, 3 * 64, 64).astype(bf)
    p["dc1_b"] = nrm((64,)).reshape(1, 64)
    p["dc1_s"] = jnp.ones((1, 64), jnp.float32)

    # deconv2 (s=2,p=1,op=1): sub-pixel phase weights (K-concatenated).
    w_t = nrm((64, 64, 3, 3))
    Wt = lambda kh, kw: w_t[:, :, kh, kw]                   # (ci, co)
    p["dc2_w_ee"] = Wt(1, 1).astype(bf)
    p["dc2_w_eo"] = jnp.concatenate([Wt(1, 2), Wt(1, 0)], axis=0).astype(bf)
    p["dc2_w_oe"] = jnp.concatenate([Wt(2, 1), Wt(0, 1)], axis=0).astype(bf)
    p["dc2_w_oo"] = jnp.concatenate([Wt(2, 2), Wt(2, 0), Wt(0, 2), Wt(0, 0)],
                                    axis=0).astype(bf)
    p["dc2_b4"] = jnp.tile(nrm((64,)).reshape(1, 64), (1, 4))

    # deconv3 (s=4,p=0,op=1): pure 1x1 phases -> one (64, 576) weight.
    w_t = nrm((64, 64, 3, 3))
    p["dc3_w"] = jnp.transpose(w_t, (0, 2, 3, 1)).reshape(64, 9 * 64).astype(bf)
    p["dc3_b"] = nrm((64,))

    # Final Conv2d(192, 64, 3, pad=1, bias=False).
    w_oihw = nrm((64, 192, 3, 3))
    w_hwio = jnp.transpose(w_oihw, (2, 3, 1, 0))            # (kh, kw, 192, 64)
    p["conv_w"] = w_hwio.reshape(3, 3 * 192, 64).astype(bf)
    return p


# --------------------------- Demo --------------------------------------------

if __name__ == "__main__":
    key = jax.random.PRNGKey(0)
    kp, kf, km, ki, kc, kx = jax.random.split(key, 6)

    B, P = 2, 128
    H = W = 16                     # small demo grid (module default is 512x512)
    grid_size = (H, W, 1)
    num_voxels = H * W

    params = make_params(kp)

    points_feature = jax.random.normal(kf, (B, P, 64), jnp.float32)
    points_mask = (jax.random.uniform(km, (B, P)) > 0.2).astype(jnp.float32)
    points_xyz = jax.random.normal(kx, (B, P, 3), jnp.float32)
    indices = jax.random.randint(ki, (B, P), 0, num_voxels).astype(jnp.int32)
    voxel_xyz = jax.random.uniform(kc, (B, P, 3), jnp.float32,
                                   minval=0.0, maxval=float(H // 2 - 1))
    points_voxel = {
        "indices": indices,
        "num_voxels": num_voxels,
        "paddings": 1.0 - points_mask,
        "voxel_xyz": voxel_xyz,
    }

    out = single_view_net_forward(params, points_xyz, points_feature,
                                  points_mask, points_voxel, grid_size)
    out = jax.block_until_ready(out)
    assert out.shape == (B, P, 64), out.shape
    assert bool(jnp.all(jnp.isfinite(out)))
    print("KERNEL_OK")
</pallas_src>

<mosaic_0001>
module attributes {stable_mosaic.version = 11 : i64} {
  func.func @_pointnet_kernel(%arg0: i32, %arg1: memref<256x64xbf16, #tpu.memory_space<vmem>>, %arg2: memref<256x1xf32, #tpu.memory_space<vmem>>, %arg3: memref<64x64xbf16, #tpu.memory_space<vmem>>, %arg4: memref<1x64xf32, #tpu.memory_space<vmem>>, %arg5: memref<1x64xf32, #tpu.memory_space<vmem>>, %arg6: memref<256x64xf32, #tpu.memory_space<vmem>>) attributes {dimension_semantics = [#tpu.dimension_semantics<parallel>], iteration_bounds = array<i64: 1>, scalar_prefetch = 0 : i64, scratch_operands = 0 : i64, tpu.core_type = #tpu.core_type<tc>, window_params = [{transform_indices = @transform_0, window_bounds = array<i64: 256, 64>}, {transform_indices = @transform_1, window_bounds = array<i64: 256, 1>}, {pipeline_mode = #tpu.pipeline_mode<synchronous>, transform_indices = @transform_2, window_bounds = array<i64: 64, 64>}, {pipeline_mode = #tpu.pipeline_mode<synchronous>, transform_indices = @transform_3, window_bounds = array<i64: 1, 64>}, {pipeline_mode = #tpu.pipeline_mode<synchronous>, transform_indices = @transform_4, window_bounds = array<i64: 1, 64>}, {transform_indices = @transform_5, window_bounds = array<i64: 256, 64>}]} {
    %c0 = arith.constant 0 : index
    %c0_0 = arith.constant 0 : index
    %0 = vector.load %arg1[%c0, %c0_0] : memref<256x64xbf16, #tpu.memory_space<vmem>>, vector<256x64xbf16>
    %c0_1 = arith.constant 0 : index
    %c0_2 = arith.constant 0 : index
    %1 = vector.load %arg3[%c0_1, %c0_2] : memref<64x64xbf16, #tpu.memory_space<vmem>>, vector<64x64xbf16>
    %cst = arith.constant dense<0.000000e+00> : vector<256x64xf32>
    %2 = tpu.matmul %0, %1, %cst {dimension_numbers = #tpu.dot_dimension_numbers<[1], [0], [0], [1], [0, 0, 1, 1], [], []>} : vector<256x64xbf16>, vector<64x64xbf16>, vector<256x64xf32> -> vector<256x64xf32>
    %c0_3 = arith.constant 0 : index
    %c0_4 = arith.constant 0 : index
    %3 = vector.load %arg4[%c0_3, %c0_4] : memref<1x64xf32, #tpu.memory_space<vmem>>, vector<1x64xf32>
    %4 = vector.broadcast %3 : vector<1x64xf32> to vector<256x64xf32>
    %5 = arith.mulf %2, %4 : vector<256x64xf32>
    %c0_5 = arith.constant 0 : index
    %c0_6 = arith.constant 0 : index
    %6 = vector.load %arg5[%c0_5, %c0_6] : memref<1x64xf32, #tpu.memory_space<vmem>>, vector<1x64xf32>
    %7 = vector.broadcast %6 : vector<1x64xf32> to vector<256x64xf32>
    %8 = arith.addf %5, %7 : vector<256x64xf32>
    %cst_7 = arith.constant 0.000000e+00 : f32
    %9 = vector.broadcast %cst_7 : f32 to vector<256x64xf32>
    %10 = arith.maximumf %8, %9 : vector<256x64xf32>
    %c0_8 = arith.constant 0 : index
    %c0_9 = arith.constant 0 : index
    %11 = vector.load %arg2[%c0_8, %c0_9] : memref<256x1xf32, #tpu.memory_space<vmem>>, vector<256x1xf32>
    %12 = vector.broadcast %11 : vector<256x1xf32> to vector<256x64xf32>
    %13 = arith.mulf %10, %12 : vector<256x64xf32>
    %c0_10 = arith.constant 0 : index
    %c0_11 = arith.constant 0 : index
    %14 = vector.load %arg6[%c0_10, %c0_11] : memref<256x64xf32, #tpu.memory_space<vmem>>, vector<256x64xf32>
    tpu.vector_store %arg6[%c0_10, %c0_11], %13 {strides = array<i32>} : memref<256x64xf32, #tpu.memory_space<vmem>>, vector<256x64xf32>,
    return
  }
  func.func @transform_0(%arg0: i32) -> (i32, i32) {
    %c0_i32 = arith.constant 0 : i32
    %c0_i32_0 = arith.constant 0 : i32
    return %arg0, %c0_i32 : i32, i32
  }
  func.func @transform_1(%arg0: i32) -> (i32, i32) {
    %c0_i32 = arith.constant 0 : i32
    %c0_i32_0 = arith.constant 0 : i32
    return %arg0, %c0_i32 : i32, i32
  }
  func.func @transform_2(%arg0: i32) -> (i32, i32) {
    %c0_i32 = arith.constant 0 : i32
    %c0_i32_0 = arith.constant 0 : i32
    %c0_i32_1 = arith.constant 0 : i32
    return %c0_i32, %c0_i32_0 : i32, i32
  }
  func.func @transform_3(%arg0: i32) -> (i32, i32) {
    %c0_i32 = arith.constant 0 : i32
    %c0_i32_0 = arith.constant 0 : i32
    %c0_i32_1 = arith.constant 0 : i32
    return %c0_i32, %c0_i32_0 : i32, i32
  }
  func.func @transform_4(%arg0: i32) -> (i32, i32) {
    %c0_i32 = arith.constant 0 : i32
    %c0_i32_0 = arith.constant 0 : i32
    %c0_i32_1 = arith.constant 0 : i32
    return %c0_i32, %c0_i32_0 : i32, i32
  }
  func.func @transform_5(%arg0: i32) -> (i32, i32) {
    %c0_i32 = arith.constant 0 : i32
    %c0_i32_0 = arith.constant 0 : i32
    return %arg0, %c0_i32 : i32, i32
  }
}

</mosaic_0001>

<llo_original>
// kernel: tpu_custom_call.1
$region0: #{tpu_custom_call.1}
  #allocation0 [shape = 'u32[]', space=smem, size = 0x4, offset = 0x4, fixed_abs, tag = 'smem constant byte address 0x4 - core index']
  #allocation1 [shape = 'u32[144,128]{1,0:T(1,128)}', space=vmem, size = 0x12000, scoped, tag = 'internal scratch']
  %s0 = inlined_call_operand.vmem [shape: bf16[256,64], index: 0, kind: input, shape index: {}]
  %s1 = inlined_call_operand.vmem [shape: f32[256,1], index: 1, kind: input, shape index: {}]
  %s2 = inlined_call_operand.vmem [shape: bf16[64,64], index: 2, kind: input, shape index: {}]
  %s3 = inlined_call_operand.vmem [shape: f32[1,64], index: 3, kind: input, shape index: {}]
  %s4 = inlined_call_operand.vmem [shape: f32[1,64], index: 4, kind: input, shape index: {}]
  %s5 = inlined_call_operand.vmem [shape: f32[256,64], index: 5, kind: output, shape index: {}]
  %s6 = sld [smem:[#allocation0]]
  $region30: #{tpu_custom_call.1} parent=0
    _
  %s8 = ssub.s32 1, %s6
  %s9 = scalar_select 0, %s8, %s6
  // Predicated region
  $region2: #{tpu_custom_call.1} parent=0 // pred_check
    _
  $region3: #{tpu_custom_call.1} parent=0 // pred_check_branch
    %11 = sbr.rel (0) target = $region5
  $region4: #{tpu_custom_call.1} parent=0 // pred_region
    _
  $region5: #{tpu_custom_call.1} parent=0 // pred_fallthru
    _
  // Predicated region
  $region6: #{tpu_custom_call.1} parent=0 // pred_check
    _
  $region7: #{tpu_custom_call.1} parent=0 // pred_check_branch
    %13 = sbr.rel (0) target = $region9
  $region8: #{tpu_custom_call.1} parent=0 // pred_region
    _
  $region9: #{tpu_custom_call.1} parent=0 // pred_fallthru
    _
  // Predicated region
  $region10: #{tpu_custom_call.1} parent=0 // pred_check
    _
  $region11: #{tpu_custom_call.1} parent=0 // pred_check_branch
    %15 = sbr.rel (0) target = $region13
  $region12: #{tpu_custom_call.1} parent=0 // pred_region
    _
  $region13: #{tpu_custom_call.1} parent=0 // pred_fallthru
    _
  // Predicated region
  $region14: #{tpu_custom_call.1} parent=0 // pred_check
    _
  $region15: #{tpu_custom_call.1} parent=0 // pred_check_branch
    %17 = sbr.rel (0) target = $region17
  $region16: #{tpu_custom_call.1} parent=0 // pred_region
    _
  $region17: #{tpu_custom_call.1} parent=0 // pred_fallthru
    _
  // Predicated region
  $region18: #{tpu_custom_call.1} parent=0 // pred_check
    _
  $region19: #{tpu_custom_call.1} parent=0 // pred_check_branch
    %19 = sbr.rel (0) target = $region21
  $region20: #{tpu_custom_call.1} parent=0 // pred_region
    _
  $region21: #{tpu_custom_call.1} parent=0 // pred_fallthru
    _
  %v21 = vld [vmem:[%s0] sm:$0xf]
  %v22 = vld [vmem:[%s0 + $0x4] sm:$0xf]
  %v23 = vld [vmem:[%s0 + $0x8] sm:$0xf]
  %v24 = vld [vmem:[%s0 + $0xc] sm:$0xf]
  %v25 = vld [vmem:[%s0 + $0x10] sm:$0xf]
  %v26 = vld [vmem:[%s0 + $0x14] sm:$0xf]
  %v27 = vld [vmem:[%s0 + $0x18] sm:$0xf]
  %v28 = vld [vmem:[%s0 + $0x1c] sm:$0xf]
  %v29 = vld [vmem:[%s0 + $0x20] sm:$0xf]
  %v30 = vld [vmem:[%s0 + $0x24] sm:$0xf]
  %v31 = vld [vmem:[%s0 + $0x28] sm:$0xf]
  %v32 = vld [vmem:[%s0 + $0x2c] sm:$0xf]
  %v33 = vld [vmem:[%s0 + $0x30] sm:$0xf]
  %v34 = vld [vmem:[%s0 + $0x34] sm:$0xf]
  %v35 = vld [vmem:[%s0 + $0x38] sm:$0xf]
  %v36 = vld [vmem:[%s0 + $0x3c] sm:$0xf]
  %v37 = vld [vmem:[%s0 + $0x40] sm:$0xf]
  %v38 = vld [vmem:[%s0 + $0x44] sm:$0xf]
  %v39 = vld [vmem:[%s0 + $0x48] sm:$0xf]
  %v40 = vld [vmem:[%s0 + $0x4c] sm:$0xf]
  %v41 = vld [vmem:[%s0 + $0x50] sm:$0xf]
  %v42 = vld [vmem:[%s0 + $0x54] sm:$0xf]
  %v43 = vld [vmem:[%s0 + $0x58] sm:$0xf]
  %v44 = vld [vmem:[%s0 + $0x5c] sm:$0xf]
  %v45 = vld [vmem:[%s0 + $0x60] sm:$0xf]
  %v46 = vld [vmem:[%s0 + $0x64] sm:$0xf]
  %v47 = vld [vmem:[%s0 + $0x68] sm:$0xf]
  %v48 = vld [vmem:[%s0 + $0x6c] sm:$0xf]
  %v49 = vld [vmem:[%s0 + $0x70] sm:$0xf]
  %v50 = vld [vmem:[%s0 + $0x74] sm:$0xf]
  %v51 = vld [vmem:[%s0 + $0x78] sm:$0xf]
  %v52 = vld [vmem:[%s0 + $0x7c] sm:$0xf]
  %v53 = vld [vmem:[%s2] sm:$0xf]
  %v54 = vld [vmem:[%s2 + $0x4] sm:$0xf]
  %v55 = vld [vmem:[%s2 + $0x8] sm:$0xf]
  %v56 = vld [vmem:[%s2 + $0xc] sm:$0xf]
  %v57 = vld [vmem:[%s2 + $0x10] sm:$0xf]
  %v58 = vld [vmem:[%s2 + $0x14] sm:$0xf]
  %v59 = vld [vmem:[%s2 + $0x18] sm:$0xf]
  %v60 = vld [vmem:[%s2 + $0x1c] sm:$0xf]
  %v93 = vunpack.c.l.b16 %v21
  %v94 = vunpack.c.l.b16 %v22
  %v95 = vunpack.c.l.b16 %v23
  %v96 = vunpack.c.l.b16 %v24
  %v97 = vunpack.c.l.b16 %v25
  %v98 = vunpack.c.l.b16 %v26
  %v99 = vunpack.c.l.b16 %v27
  %v100 = vunpack.c.l.b16 %v28
  %v101 = vunpack.c.l.b16 %v29
  %v102 = vunpack.c.l.b16 %v30
  %v103 = vunpack.c.l.b16 %v31
  %v104 = vunpack.c.l.b16 %v32
  %v105 = vunpack.c.l.b16 %v33
  %v106 = vunpack.c.l.b16 %v34
  %v107 = vunpack.c.l.b16 %v35
  %v108 = vunpack.c.l.b16 %v36
  %v109 = vunpack.c.l.b16 %v37
  %v110 = vunpack.c.l.b16 %v38
  %v111 = vunpack.c.l.b16 %v39
  %v112 = vunpack.c.l.b16 %v40
  %v113 = vunpack.c.l.b16 %v41
  %v114 = vunpack.c.l.b16 %v42
  %v115 = vunpack.c.l.b16 %v43
  %v116 = vunpack.c.l.b16 %v44
  %v117 = vunpack.c.l.b16 %v45
  %v118 = vunpack.c.l.b16 %v46
  %v119 = vunpack.c.l.b16 %v47
  %v120 = vunpack.c.l.b16 %v48
  %v121 = vunpack.c.l.b16 %v49
  %v122 = vunpack.c.l.b16 %v50
  %v123 = vunpack.c.l.b16 %v51
  %v124 = vunpack.c.l.b16 %v52
  %v125 = vpack.c.b16 %v94, %v93
  %v126 = vpack.c.b16 %v96, %v95
  %v127 = vpack.c.b16 %v98, %v97
  %v128 = vpack.c.b16 %v100, %v99
  %v129 = vpack.c.b16 %v102, %v101
  %v130 = vpack.c.b16 %v104, %v103
  %v131 = vpack.c.b16 %v106, %v105
  %v132 = vpack.c.b16 %v108, %v107
  %v133 = vpack.c.b16 %v110, %v109
  %v134 = vpack.c.b16 %v112, %v111
  %v135 = vpack.c.b16 %v114, %v113
  %v136 = vpack.c.b16 %v116, %v115
  %v137 = vpack.c.b16 %v118, %v117
  %v138 = vpack.c.b16 %v120, %v119
  %v139 = vpack.c.b16 %v122, %v121
  %v140 = vpack.c.b16 %v124, %v123
  %v149 = vunpack.c.l.b16 %v53
  %v150 = vunpack.c.l.b16 %v54
  %v151 = vunpack.c.l.b16 %v55
  %v152 = vunpack.c.l.b16 %v56
  %v153 = vunpack.c.l.b16 %v57
  %v154 = vunpack.c.l.b16 %v58
  %v155 = vunpack.c.l.b16 %v59
  %v156 = vunpack.c.l.b16 %v60
  %v157 = vpack.c.b16 %v150, %v149
  %v158 = vpack.c.b16 %v152, %v151
  %v159 = vpack.c.b16 %v154, %v153
  %v160 = vpack.c.b16 %v156, %v155
  %vm165 = vcmask 523264
  %v167 = vsel %vm165, %v125, 0
  %v170 = vsel %vm165, %v126, 0
  %v173 = vsel %vm165, %v127, 0
  %v176 = vsel %vm165, %v128, 0
  %v179 = vsel %vm165, %v129, 0
  %v182 = vsel %vm165, %v130, 0
  %v185 = vsel %vm165, %v131, 0
  %v188 = vsel %vm165, %v132, 0
  %v191 = vsel %vm165, %v133, 0
  %v194 = vsel %vm165, %v134, 0
  %v197 = vsel %vm165, %v135, 0
  %v200 = vsel %vm165, %v136, 0
  %v203 = vsel %vm165, %v137, 0
  %v206 = vsel %vm165, %v138, 0
  %v209 = vsel %vm165, %v139, 0
  %v212 = vsel %vm165, %v140, 0
  %214 = vmatprep.subr.bf16.mxu0 0
  %215 = vmatpush1.bf16.msra.mxu0 %v157
  %216 = vmatprep.subr.bf16.mxu0 0
  %217 = vmatpush1.bf16.msra.mxu0 %v158
  %218 = vmatprep.subr.bf16.mxu0 0
  %219 = vmatpush1.bf16.msra.mxu0 %v159
  %220 = vmatprep.subr.bf16.mxu0 0
  %221 = vmatpush1.bf16.msra.mxu0 %v160
  %222 = vmatprep.subr.bf16.mxu0 0
  %223 = vmatpush1.bf16.msra.mxu0 0
  %224 = vmatprep.subr.bf16.mxu0 0
  %225 = vmatpush1.bf16.msra.mxu0 0
  %226 = vmatprep.subr.bf16.mxu0 0
  %227 = vmatpush1.bf16.msra.mxu0 0
  %228 = vmatprep.subr.bf16.mxu0 0
  %229 = vmatpush1.bf16.msra.mxu0 0
  %230 = vmatprep.subr.bf16.mxu0 0
  %231 = vmatpush1.bf16.msra.mxu0 0
  %232 = vmatprep.subr.bf16.mxu0 0
  %233 = vmatpush1.bf16.msra.mxu0 0
  %234 = vmatprep.subr.bf16.mxu0 0
  %235 = vmatpush1.bf16.msra.mxu0 0
  %236 = vmatprep.subr.bf16.mxu0 0
  %237 = vmatpush1.bf16.msra.mxu0 0
  %238 = vmatprep.subr.bf16.mxu0 0
  %239 = vmatpush1.bf16.msra.mxu0 0
  %240 = vmatprep.subr.bf16.mxu0 0
  %241 = vmatpush1.bf16.msra.mxu0 0
  %242 = vmatprep.subr.bf16.mxu0 0
  %243 = vmatpush1.bf16.msra.mxu0 0
  %244 = vmatprep.subr.bf16.mxu0 0
  %245 = vmatpush1.bf16.msra.mxu0 0
  %246 = vmatprep.mubr.bf16.mxu0 0
  %247 = vmatmul.mubr.bf16.gmra.mrb[0].mxu0 %v167
  %v248 = vpop.f32.mrb[0].mxu0
  %v249 = vadd.f32 0.0, %v248
  %v250 = vpop.f32.mrb[0].mxu0
  %v251 = vpop.f32.mrb[0].mxu0
  %v252 = vadd.f32 0.0, %v251
  %v253 = vpop.f32.mrb[0].mxu0
  %254 = vmatprep.mubr.bf16.mxu0 0
  %255 = vmatmul.mubr.bf16.gmra.mrb[0].mxu0 %v170
  %v256 = vpop.f32.mrb[0].mxu0
  %v257 = vadd.f32 0.0, %v256
  %v258 = vpop.f32.mrb[0].mxu0
  %v259 = vpop.f32.mrb[0].mxu0
  %v260 = vadd.f32 0.0, %v259
  %v261 = vpop.f32.mrb[0].mxu0
  %262 = vmatprep.mubr.bf16.mxu0 0
  %263 = vmatmul.mubr.bf16.gmra.mrb[0].mxu0 %v173
  %v264 = vpop.f32.mrb[0].mxu0
  %v265 = vadd.f32 0.0, %v264
  %v266 = vpop.f32.mrb[0].mxu0
  %v267 = vpop.f32.mrb[0].mxu0
  %v268 = vadd.f32 0.0, %v267
  %v269 = vpop.f32.mrb[0].mxu0
  %270 = vmatprep.mubr.bf16.mxu0 0
  %271 = vmatmul.mubr.bf16.gmra.mrb[0].mxu0 %v176
  %v272 = vpop.f32.mrb[0].mxu0
  %v273 = vadd.f32 0.0, %v272
  %v274 = vpop.f32.mrb[0].mxu0
  %v275 = vpop.f32.mrb[0].mxu0
  %v276 = vadd.f32 0.0, %v275
  %v277 = vpop.f32.mrb[0].mxu0
  %278 = vmatprep.mubr.bf16.mxu0 0
  %279 = vmatmul.mubr.bf16.gmra.mrb[0].mxu0 %v179
  %v280 = vpop.f32.mrb[0].mxu0
  %v281 = vadd.f32 0.0, %v280
  %v282 = vpop.f32.mrb[0].mxu0
  %v283 = vpop.f32.mrb[0].mxu0
  %v284 = vadd.f32 0.0, %v283
  %v285 = vpop.f32.mrb[0].mxu0
  %286 = vmatprep.mubr.bf16.mxu0 0
  %287 = vmatmul.mubr.bf16.gmra.mrb[0].mxu0 %v182
  %v288 = vpop.f32.mrb[0].mxu0
  %v289 = vadd.f32 0.0, %v288
  %v290 = vpop.f32.mrb[0].mxu0
  %v291 = vpop.f32.mrb[0].mxu0
  %v292 = vadd.f32 0.0, %v291
  %v293 = vpop.f32.mrb[0].mxu0
  %294 = vmatprep.mubr.bf16.mxu0 0
  %295 = vmatmul.mubr.bf16.gmra.mrb[0].mxu0 %v185
  %v296 = vpop.f32.mrb[0].mxu0
  %v297 = vadd.f32 0.0, %v296
  %v298 = vpop.f32.mrb[0].mxu0
  %v299 = vpop.f32.mrb[0].mxu0
  %v300 = vadd.f32 0.0, %v299
  %v301 = vpop.f32.mrb[0].mxu0
  %302 = vmatprep.mubr.bf16.mxu0 0
  %303 = vmatmul.mubr.bf16.gmra.mrb[0].mxu0 %v188
  %v304 = vpop.f32.mrb[0].mxu0
  %v305 = vadd.f32 0.0, %v304
  %v306 = vpop.f32.mrb[0].mxu0
  %v307 = vpop.f32.mrb[0].mxu0
  %v308 = vadd.f32 0.0, %v307
  %v309 = vpop.f32.mrb[0].mxu0
  %310 = vmatprep.mubr.bf16.mxu0 0
  %311 = vmatmul.mubr.bf16.gmra.mrb[0].mxu0 %v191
  %v312 = vpop.f32.mrb[0].mxu0
  %v313 = vadd.f32 0.0, %v312
  %v314 = vpop.f32.mrb[0].mxu0
  %v315 = vpop.f32.mrb[0].mxu0
  %v316 = vadd.f32 0.0, %v315
  %v317 = vpop.f32.mrb[0].mxu0
  %318 = vmatprep.mubr.bf16.mxu0 0
  %319 = vmatmul.mubr.bf16.gmra.mrb[0].mxu0 %v194
  %v320 = vpop.f32.mrb[0].mxu0
  %v321 = vadd.f32 0.0, %v320
  %v322 = vpop.f32.mrb[0].mxu0
  %v323 = vpop.f32.mrb[0].mxu0
  %v324 = vadd.f32 0.0, %v323
  %v325 = vpop.f32.mrb[0].mxu0
  %326 = vmatprep.mubr.bf16.mxu0 0
  %327 = vmatmul.mubr.bf16.gmra.mrb[0].mxu0 %v197
  %v328 = vpop.f32.mrb[0].mxu0
  %v329 = vadd.f32 0.0, %v328
  %v330 = vpop.f32.mrb[0].mxu0
  %v331 = vpop.f32.mrb[0].mxu0
  %v332 = vadd.f32 0.0, %v331
  %v333 = vpop.f32.mrb[0].mxu0
  %334 = vmatprep.mubr.bf16.mxu0 0
  %335 = vmatmul.mubr.bf16.gmra.mrb[0].mxu0 %v200
  %v336 = vpop.f32.mrb[0].mxu0
  %v337 = vadd.f32 0.0, %v336
  %v338 = vpop.f32.mrb[0].mxu0
  %v339 = vpop.f32.mrb[0].mxu0
  %v340 = vadd.f32 0.0, %v339
  %v341 = vpop.f32.mrb[0].mxu0
  %342 = vmatprep.mubr.bf16.mxu0 0
  %343 = vmatmul.mubr.bf16.gmra.mrb[0].mxu0 %v203
  %v344 = vpop.f32.mrb[0].mxu0
  %v345 = vadd.f32 0.0, %v344
  %v346 = vpop.f32.mrb[0].mxu0
  %v347 = vpop.f32.mrb[0].mxu0
  %v348 = vadd.f32 0.0, %v347
  %v349 = vpop.f32.mrb[0].mxu0
  %350 = vmatprep.mubr.bf16.mxu0 0
  %351 = vmatmul.mubr.bf16.gmra.mrb[0].mxu0 %v206
  %v352 = vpop.f32.mrb[0].mxu0
  %v353 = vadd.f32 0.0, %v352
  %v354 = vpop.f32.mrb[0].mxu0
  %v355 = vpop.f32.mrb[0].mxu0
  %v356 = vadd.f32 0.0, %v355
  %v357 = vpop.f32.mrb[0].mxu0
  %358 = vmatprep.mubr.bf16.mxu0 0
  %359 = vmatmul.mubr.bf16.gmra.mrb[0].mxu0 %v209
  %v360 = vpop.f32.mrb[0].mxu0
  %v361 = vadd.f32 0.0, %v360
  %v362 = vpop.f32.mrb[0].mxu0
  %v363 = vpop.f32.mrb[0].mxu0
  %v364 = vadd.f32 0.0, %v363
  %v365 = vpop.f32.mrb[0].mxu0
  %366 = vmatprep.mubr.bf16.mxu0 0
  %367 = vmatmul.mubr.bf16.gmra.mrb[0].mxu0 %v212
  %v368 = vpop.f32.mrb[0].mxu0
  %v369 = vadd.f32 0.0, %v368
  %v370 = vpop.f32.mrb[0].mxu0
  %v371 = vpop.f32.mrb[0].mxu0
  %v372 = vadd.f32 0.0, %v371
  %v373 = vpop.f32.mrb[0].mxu0
  %374 = vdwg.mxu0
  %v375 = vld [vmem:[%s3] sm:$0x1]
  %v377 = vlaneseq
  %v378 = vshrl.u32 %v377, 7
  %v379 = vsub.s32 0, %v378
  %v380 = vrot.slane %v375, %v379
  %v382 = vmul.f32 %v249, %v380
  %v383 = vmul.f32 %v252, %v380
  %v384 = vmul.f32 %v257, %v380
  %v385 = vmul.f32 %v260, %v380
  %v386 = vmul.f32 %v265, %v380
  %v387 = vmul.f32 %v268, %v380
  %v388 = vmul.f32 %v273, %v380
  %v389 = vmul.f32 %v276, %v380
  %v390 = vmul.f32 %v281, %v380
  %v391 = vmul.f32 %v284, %v380
  %v392 = vmul.f32 %v289, %v380
  %v393 = vmul.f32 %v292, %v380
  %v394 = vmul.f32 %v297, %v380
  %v395 = vmul.f32 %v300, %v380
  %v396 = vmul.f32 %v305, %v380
  %v397 = vmul.f32 %v308, %v380
  %v398 = vmul.f32 %v313, %v380
  %v399 = vmul.f32 %v316, %v380
  %v400 = vmul.f32 %v321, %v380
  %v401 = vmul.f32 %v324, %v380
  %v402 = vmul.f32 %v329, %v380
  %v403 = vmul.f32 %v332, %v380
  %v404 = vmul.f32 %v337, %v380
  %v405 = vmul.f32 %v340, %v380
  %v406 = vmul.f32 %v345, %v380
  %v407 = vmul.f32 %v348, %v380
  %v408 = vmul.f32 %v353, %v380
  %v409 = vmul.f32 %v356, %v380
  %v410 = vmul.f32 %v361, %v380
  %v411 = vmul.f32 %v364, %v380
  %v412 = vmul.f32 %v369, %v380
  %v413 = vmul.f32 %v372, %v380
  %v414 = vld [vmem:[%s4] sm:$0x1]
  %v416 = vlaneseq
  %v417 = vshrl.u32 %v416, 7
  %v418 = vsub.s32 0, %v417
  %v419 = vrot.slane %v414, %v418
  %v421 = vadd.f32 %v382, %v419
  %v422 = vadd.f32 %v383, %v419
  %v423 = vadd.f32 %v384, %v419
  %v424 = vadd.f32 %v385, %v419
  %v425 = vadd.f32 %v386, %v419
  %v426 = vadd.f32 %v387, %v419
  %v427 = vadd.f32 %v388, %v419
  %v428 = vadd.f32 %v389, %v419
  %v429 = vadd.f32 %v390, %v419
  %v430 = vadd.f32 %v391, %v419
  %v431 = vadd.f32 %v392, %v419
  %v432 = vadd.f32 %v393, %v419
  %v433 = vadd.f32 %v394, %v419
  %v434 = vadd.f32 %v395, %v419
  %v435 = vadd.f32 %v396, %v419
  %v436 = vadd.f32 %v397, %v419
  %v437 = vadd.f32 %v398, %v419
  %v438 = vadd.f32 %v399, %v419
  %v439 = vadd.f32 %v400, %v419
  %v440 = vadd.f32 %v401, %v419
  %v441 = vadd.f32 %v402, %v419
  %v442 = vadd.f32 %v403, %v419
  %v443 = vadd.f32 %v404, %v419
  %v444 = vadd.f32 %v405, %v419
  %v445 = vadd.f32 %v406, %v419
  %v446 = vadd.f32 %v407, %v419
  %v447 = vadd.f32 %v408, %v419
  %v448 = vadd.f32 %v409, %v419
  %v449 = vadd.f32 %v410, %v419
  %v450 = vadd.f32 %v411, %v419
  %v451 = vadd.f32 %v412, %v419
  %v452 = vadd.f32 %v413, %v419
  %v453 = vmax.f32 %v421, 0.0
  %v454 = vmax.f32 %v422, 0.0
  %v455 = vmax.f32 %v423, 0.0
  %v456 = vmax.f32 %v424, 0.0
  %v457 = vmax.f32 %v425, 0.0
  %v458 = vmax.f32 %v426, 0.0
  %v459 = vmax.f32 %v427, 0.0
  %v460 = vmax.f32 %v428, 0.0
  %v461 = vmax.f32 %v429, 0.0
  %v462 = vmax.f32 %v430, 0.0
  %v463 = vmax.f32 %v431, 0.0
  %v464 = vmax.f32 %v432, 0.0
  %v465 = vmax.f32 %v433, 0.0
  %v466 = vmax.f32 %v434, 0.0
  %v467 = vmax.f32 %v435, 0.0
  %v468 = vmax.f32 %v436, 0.0
  %v469 = vmax.f32 %v437, 0.0
  %v470 = vmax.f32 %v438, 0.0
  %v471 = vmax.f32 %v439, 0.0
  %v472 = vmax.f32 %v440, 0.0
  %v473 = vmax.f32 %v441, 0.0
  %v474 = vmax.f32 %v442, 0.0
  %v475 = vmax.f32 %v443, 0.0
  %v476 = vmax.f32 %v444, 0.0
  %v477 = vmax.f32 %v445, 0.0
  %v478 = vmax.f32 %v446, 0.0
  %v479 = vmax.f32 %v447, 0.0
  %v480 = vmax.f32 %v448, 0.0
  %v481 = vmax.f32 %v449, 0.0
  %v482 = vmax.f32 %v450, 0.0
  %v483 = vmax.f32 %v451, 0.0
  %v484 = vmax.f32 %v452, 0.0
  %v485 = vld [vmem:[%s1] sm:$0xff]
  %v486 = vld [vmem:[%s1 + $0x8] sm:$0xff]
  %v487 = vld [vmem:[%s1 + $0x10] sm:$0xff]
  %v488 = vld [vmem:[%s1 + $0x18] sm:$0xff]
  %v489 = vld [vmem:[%s1 + $0x20] sm:$0xff]
  %v490 = vld [vmem:[%s1 + $0x28] sm:$0xff]
  %v491 = vld [vmem:[%s1 + $0x30] sm:$0xff]
  %v492 = vld [vmem:[%s1 + $0x38] sm:$0xff]
  %v493 = vld [vmem:[%s1 + $0x40] sm:$0xff]
  %v494 = vld [vmem:[%s1 + $0x48] sm:$0xff]
  %v495 = vld [vmem:[%s1 + $0x50] sm:$0xff]
  %v496 = vld [vmem:[%s1 + $0x58] sm:$0xff]
  %v497 = vld [vmem:[%s1 + $0x60] sm:$0xff]
  %v498 = vld [vmem:[%s1 + $0x68] sm:$0xff]
  %v499 = vld [vmem:[%s1 + $0x70] sm:$0xff]
  %v500 = vld [vmem:[%s1 + $0x78] sm:$0xff]
  %v501 = vld [vmem:[%s1 + $0x80] sm:$0xff]
  %v502 = vld [vmem:[%s1 + $0x88] sm:$0xff]
  %v503 = vld [vmem:[%s1 + $0x90] sm:$0xff]
  %v504 = vld [vmem:[%s1 + $0x98] sm:$0xff]
  %v505 = vld [vmem:[%s1 + $0xa0] sm:$0xff]
  %v506 = vld [vmem:[%s1 + $0xa8] sm:$0xff]
  %v507 = vld [vmem:[%s1 + $0xb0] sm:$0xff]
  %v508 = vld [vmem:[%s1 + $0xb8] sm:$0xff]
  %v509 = vld [vmem:[%s1 + $0xc0] sm:$0xff]
  %v510 = vld [vmem:[%s1 + $0xc8] sm:$0xff]
  %v511 = vld [vmem:[%s1 + $0xd0] sm:$0xff]
  %v512 = vld [vmem:[%s1 + $0xd8] sm:$0xff]
  %v513 = vld [vmem:[%s1 + $0xe0] sm:$0xff]
  %v514 = vld [vmem:[%s1 + $0xe8] sm:$0xff]
  %v515 = vld [vmem:[%s1 + $0xf0] sm:$0xff]
  %v516 = vld [vmem:[%s1 + $0xf8] sm:$0xff]
  %518 = vset.pattern.permute.xlu0 0
  %519 = vperm.xlu0 %518, %v485
  %v520 = vpop.permute.xlu0 %519
  %523 = vset.pattern.permute.xlu0 0
  %524 = vperm.xlu0 %523, %v486
  %v525 = vpop.permute.xlu0 %524
  %528 = vset.pattern.permute.xlu0 0
  %529 = vperm.xlu0 %528, %v487
  %v530 = vpop.permute.xlu0 %529
  %533 = vset.pattern.permute.xlu0 0
  %534 = vperm.xlu0 %533, %v488
  %v535 = vpop.permute.xlu0 %534
  %538 = vset.pattern.permute.xlu0 0
  %539 = vperm.xlu0 %538, %v489
  %v540 = vpop.permute.xlu0 %539
  %543 = vset.pattern.permute.xlu0 0
  %544 = vperm.xlu0 %543, %v490
  %v545 = vpop.permute.xlu0 %544
  %548 = vset.pattern.permute.xlu0 0
  %549 = vperm.xlu0 %548, %v491
  %v550 = vpop.permute.xlu0 %549
  %553 = vset.pattern.permute.xlu0 0
  %554 = vperm.xlu0 %553, %v492
  %v555 = vpop.permute.xlu0 %554
  %558 = vset.pattern.permute.xlu0 0
  %559 = vperm.xlu0 %558, %v493
  %v560 = vpop.permute.xlu0 %559
  %563 = vset.pattern.permute.xlu0 0
  %564 = vperm.xlu0 %563, %v494
  %v565 = vpop.permute.xlu0 %564
  %568 = vset.pattern.permute.xlu0 0
  %569 = vperm.xlu0 %568, %v495
  %v570 = vpop.permute.xlu0 %569
  %573 = vset.pattern.permute.xlu0 0
  %574 = vperm.xlu0 %573, %v496
  %v575 = vpop.permute.xlu0 %574
  %578 = vset.pattern.permute.xlu0 0
  %579 = vperm.xlu0 %578, %v497
  %v580 = vpop.permute.xlu0 %579
  %583 = vset.pattern.permute.xlu0 0
  %584 = vperm.xlu0 %583, %v498
  %v585 = vpop.permute.xlu0 %584
  %588 = vset.pattern.permute.xlu0 0
  %589 = vperm.xlu0 %588, %v499
  %v590 = vpop.permute.xlu0 %589
  %593 = vset.pattern.permute.xlu0 0
  %594 = vperm.xlu0 %593, %v500
  %v595 = vpop.permute.xlu0 %594
  %598 = vset.pattern.permute.xlu0 0
  %599 = vperm.xlu0 %598, %v501
  %v600 = vpop.permute.xlu0 %599
  %603 = vset.pattern.permute.xlu0 0
  %604 = vperm.xlu0 %603, %v502
  %v605 = vpop.permute.xlu0 %604
  %608 = vset.pattern.permute.xlu0 0
  %609 = vperm.xlu0 %608, %v503
  %v610 = vpop.permute.xlu0 %609
  %613 = vset.pattern.permute.xlu0 0
  %614 = vperm.xlu0 %613, %v504
  %v615 = vpop.permute.xlu0 %614
  %618 = vset.pattern.permute.xlu0 0
  %619 = vperm.xlu0 %618, %v505
  %v620 = vpop.permute.xlu0 %619
  %623 = vset.pattern.permute.xlu0 0
  %624 = vperm.xlu0 %623, %v506
  %v625 = vpop.permute.xlu0 %624
  %628 = vset.pattern.permute.xlu0 0
  %629 = vperm.xlu0 %628, %v507
  %v630 = vpop.permute.xlu0 %629
  %633 = vset.pattern.permute.xlu0 0
  %634 = vperm.xlu0 %633, %v508
  %v635 = vpop.permute.xlu0 %634
  %638 = vset.pattern.permute.xlu0 0
  %639 = vperm.xlu0 %638, %v509
  %v640 = vpop.permute.xlu0 %639
  %643 = vset.pattern.permute.xlu0 0
  %644 = vperm.xlu0 %643, %v510
  %v645 = vpop.permute.xlu0 %644
  %648 = vset.pattern.permute.xlu0 0
  %649 = vperm.xlu0 %648, %v511
  %v650 = vpop.permute.xlu0 %649
  %653 = vset.pattern.permute.xlu0 0
  %654 = vperm.xlu0 %653, %v512
  %v655 = vpop.permute.xlu0 %654
  %658 = vset.pattern.permute.xlu0 0
  %659 = vperm.xlu0 %658, %v513
  %v660 = vpop.permute.xlu0 %659
  %663 = vset.pattern.permute.xlu0 0
  %664 = vperm.xlu0 %663, %v514
  %v665 = vpop.permute.xlu0 %664
  %668 = vset.pattern.permute.xlu0 0
  %669 = vperm.xlu0 %668, %v515
  %v670 = vpop.permute.xlu0 %669
  %673 = vset.pattern.permute.xlu0 0
  %674 = vperm.xlu0 %673, %v516
  %v675 = vpop.permute.xlu0 %674
  %v677 = vmul.f32 %v453, %v520
  %v678 = vmul.f32 %v454, %v525
  %v679 = vmul.f32 %v455, %v530
  %v680 = vmul.f32 %v456, %v535
  %v681 = vmul.f32 %v457, %v540
  %v682 = vmul.f32 %v458, %v545
  %v683 = vmul.f32 %v459, %v550
  %v684 = vmul.f32 %v460, %v555
  %v685 = vmul.f32 %v461, %v560
  %v686 = vmul.f32 %v462, %v565
  %v687 = vmul.f32 %v463, %v570
  %v688 = vmul.f32 %v464, %v575
  %v689 = vmul.f32 %v465, %v580
  %v690 = vmul.f32 %v466, %v585
  %v691 = vmul.f32 %v467, %v590
  %v692 = vmul.f32 %v468, %v595
  %v693 = vmul.f32 %v469, %v600
  %v694 = vmul.f32 %v470, %v605
  %v695 = vmul.f32 %v471, %v610
  %v696 = vmul.f32 %v472, %v615
  %v697 = vmul.f32 %v473, %v620
  %v698 = vmul.f32 %v474, %v625
  %v699 = vmul.f32 %v475, %v630
  %v700 = vmul.f32 %v476, %v635
  %v701 = vmul.f32 %v477, %v640
  %v702 = vmul.f32 %v478, %v645
  %v703 = vmul.f32 %v479, %v650
  %v704 = vmul.f32 %v480, %v655
  %v705 = vmul.f32 %v481, %v660
  %v706 = vmul.f32 %v482, %v665
  %v707 = vmul.f32 %v483, %v670
  %v708 = vmul.f32 %v484, %v675
  %709 = vst.msk [vmem:[%s5] sm:$0xff] %vm165, %v677
  %710 = vst.msk [vmem:[%s5 + $0x8] sm:$0xff] %vm165, %v678
  %711 = vst.msk [vmem:[%s5 + $0x10] sm:$0xff] %vm165, %v679
  %712 = vst.msk [vmem:[%s5 + $0x18] sm:$0xff] %vm165, %v680
  %713 = vst.msk [vmem:[%s5 + $0x20] sm:$0xff] %vm165, %v681
  %714 = vst.msk [vmem:[%s5 + $0x28] sm:$0xff] %vm165, %v682
  %715 = vst.msk [vmem:[%s5 + $0x30] sm:$0xff] %vm165, %v683
  %716 = vst.msk [vmem:[%s5 + $0x38] sm:$0xff] %vm165, %v684
  %717 = vst.msk [vmem:[%s5 + $0x40] sm:$0xff] %vm165, %v685
  %718 = vst.msk [vmem:[%s5 + $0x48] sm:$0xff] %vm165, %v686
  %719 = vst.msk [vmem:[%s5 + $0x50] sm:$0xff] %vm165, %v687
  %720 = vst.msk [vmem:[%s5 + $0x58] sm:$0xff] %vm165, %v688
  %721 = vst.msk [vmem:[%s5 + $0x60] sm:$0xff] %vm165, %v689
  %722 = vst.msk [vmem:[%s5 + $0x68] sm:$0xff] %vm165, %v690
  %723 = vst.msk [vmem:[%s5 + $0x70] sm:$0xff] %vm165, %v691
  %724 = vst.msk [vmem:[%s5 + $0x78] sm:$0xff] %vm165, %v692
  %725 = vst.msk [vmem:[%s5 + $0x80] sm:$0xff] %vm165, %v693
  %726 = vst.msk [vmem:[%s5 + $0x88] sm:$0xff] %vm165, %v694
  %727 = vst.msk [vmem:[%s5 + $0x90] sm:$0xff] %vm165, %v695
  %728 = vst.msk [vmem:[%s5 + $0x98] sm:$0xff] %vm165, %v696
  %729 = vst.msk [vmem:[%s5 + $0xa0] sm:$0xff] %vm165, %v697
  %730 = vst.msk [vmem:[%s5 + $0xa8] sm:$0xff] %vm165, %v698
  %731 = vst.msk [vmem:[%s5 + $0xb0] sm:$0xff] %vm165, %v699
  %732 = vst.msk [vmem:[%s5 + $0xb8] sm:$0xff] %vm165, %v700
  %733 = vst.msk [vmem:[%s5 + $0xc0] sm:$0xff] %vm165, %v701
  %734 = vst.msk [vmem:[%s5 + $0xc8] sm:$0xff] %vm165, %v702
  %735 = vst.msk [vmem:[%s5 + $0xd0] sm:$0xff] %vm165, %v703
  %736 = vst.msk [vmem:[%s5 + $0xd8] sm:$0xff] %vm165, %v704
  %737 = vst.msk [vmem:[%s5 + $0xe0] sm:$0xff] %vm165, %v705
  %738 = vst.msk [vmem:[%s5 + $0xe8] sm:$0xff] %vm165, %v706
  %739 = vst.msk [vmem:[%s5 + $0xf0] sm:$0xff] %vm165, %v707
  %740 = vst.msk [vmem:[%s5 + $0xf8] sm:$0xff] %vm165, %v708
  // Predicated region
  $region22: #{tpu_custom_call.1} parent=0 // pred_check
    _
  $region23: #{tpu_custom_call.1} parent=0 // pred_check_branch
    %742 = sbr.rel (0) target = $region25
  $region24: #{tpu_custom_call.1} parent=0 // pred_region
    _
  $region25: #{tpu_custom_call.1} parent=0 // pred_fallthru
    _
  // Predicated region
  $region26: #{tpu_custom_call.1} parent=0 // pred_check
    _
  $region27: #{tpu_custom_call.1} parent=0 // pred_check_branch
    %744 = sbr.rel (0) target = $region29
  $region28: #{tpu_custom_call.1} parent=0 // pred_region
    _
  $region29: #{tpu_custom_call.1} parent=0 // pred_fallthru
    _

</llo_original>
